<compile_context>
chip_gen: v7x
topology: tpu7x:2x2x1
jax: 0.10.0
libtpu: 0.0.40
codegen_flags: <defaults>
</compile_context>

<pallas_src>
import jax
import jax.numpy as jnp
from jax.experimental import pallas as pl
from jax.experimental.pallas import tpu as pltpu


def _add_pos_kernel(x_ref, pos_ref, o_ref):
    # x_ref:   (TB, TL)  flattened (seq*d_model) strip for TB batch rows
    # pos_ref: (1,  TL)  matching strip of the flattened positional embedding
    # o_ref:   (TB, TL)
    # The (1, TL) operand broadcasts across the sublane axis inside the VPU add.
    o_ref[...] = (x_ref[...] + pos_ref[...]).astype(o_ref.dtype)


def _cdiv(a: int, b: int) -> int:
    return -(-a // b)


def _chip_tuning():
    """Per-generation (block-byte target, vmem_limit_bytes or None, dual_core flag).

    v7x-class (<= 64 MiB VMEM per TC, ~3.2 TB/s HBM): 4 MiB blocks roughly halve the
    relative per-grid-step overhead; raise the scoped-VMEM limit for headroom (in+out
    double buffers = ~4x block = 16 MiB, well under the 40 MiB limit / 64 MiB physical).
    v5e/v6e (128 MiB VMEM): 2 MiB blocks already sit near the HBM roofline and the
    ~8 MiB double-buffered footprint fits v5e's 16 MiB default scoped VMEM.
    Detection failure: conservative 2 MiB target, no override.
    """
    try:
        info = pltpu.get_tpu_info()
        vmem = getattr(info, "vmem_capacity_bytes", None)
    except Exception:
        vmem = None
    if vmem is not None and vmem <= (64 << 20):
        return 4 << 20, 40 << 20, True
    return 2 << 20, None, False


def learned_positional_encoding(x: jax.Array, pos_embedding: jax.Array) -> jax.Array:
    """x: (B, S, D), pos_embedding: (max_len, D)  ->  (B, S, D)"""
    B, S, D = x.shape
    pos = pos_embedding[:S]          # static slice, matches pos_embedding[:x.size(1)]
    L = S * D                        # fuse (S, D) into one lane-dense axis

    out_dtype = jnp.result_type(x.dtype, pos_embedding.dtype)
    x_item = jnp.dtype(x.dtype).itemsize
    pos_item = jnp.dtype(pos_embedding.dtype).itemsize
    out_item = jnp.dtype(out_dtype).itemsize

    # Free row-major views: last dim is now large and lane-dense.
    x2 = x.reshape(B, L)
    pos2 = pos.reshape(1, L)

    blk_target, vmem_limit, dual_core = _chip_tuning()

    # ---- Block sizing: rows first, then grow the lane tile to the byte target ----
    # Batch-row tile: 256 rows max. 256 is a multiple of the packed sublane alignment
    # for every dtype (8 f32 / 16 bf16 / 32 int8); a smaller B takes the full axis,
    # which is always a legal block extent regardless of alignment.
    tb = B if B <= 256 else 256

    # Lane tile: multiple of 128 sized so tb*tl*out_item ~= blk_target. Trailing partial
    # blocks are masked by the cdiv grid, so no exact-divisor requirement.
    if tb * L * out_item <= blk_target or L < 128:
        tl = L                                           # whole flattened axis per block
    else:
        tl = max(128, (blk_target // (tb * out_item)) // 128 * 128)
        tl = min(tl, L)

    # Dual-TC parts: keep >= ~4 grid steps per core so the software pipeline stays full,
    # but never shrink blocks below 512 KiB (tiny problems just run in few steps).
    if dual_core:
        min_block_bytes = 512 << 10
        while (_cdiv(L, tl) * _cdiv(B, tb) < 8
               and tl % 256 == 0
               and tb * (tl // 2) * out_item >= min_block_bytes):
            tl //= 2

    n_l = _cdiv(L, tl)
    n_b = _cdiv(B, tb)

    cost = pl.CostEstimate(
        flops=B * L,
        transcendentals=0,
        bytes_accessed=B * L * x_item + B * L * out_item + L * pos_item,
    )

    cp_kwargs = dict(dimension_semantics=("parallel", "parallel"))
    if vmem_limit is not None:
        cp_kwargs["vmem_limit_bytes"] = vmem_limit

    # Note: input_output_aliases={0: 0} would save the output allocation, but outside a
    # donating jit XLA inserts a full copy of x to satisfy the alias -> intentionally omitted.
    out2 = pl.pallas_call(
        _add_pos_kernel,
        out_shape=jax.ShapeDtypeStruct((B, L), out_dtype),
        grid_spec=pl.GridSpec(
            # Batch-tile axis innermost: pos block index is constant across consecutive
            # steps, so each pos strip is fetched exactly once.
            grid=(n_l, n_b),
            in_specs=[
                pl.BlockSpec((tb, tl), lambda j, b: (b, j)),
                pl.BlockSpec((1, tl), lambda j, b: (0, j)),
            ],
            out_specs=pl.BlockSpec((tb, tl), lambda j, b: (b, j)),
        ),
        compiler_params=pltpu.CompilerParams(**cp_kwargs),
        cost_estimate=cost,
    )(x2, pos2)

    return out2.reshape(B, S, D)


if __name__ == "__main__":
    # Module config consistent with __init__: d_model=32, max_len=500
    d_model = 32
    max_len = 500
    B, S = 2, 8

    key = jax.random.PRNGKey(0)
    k_x, k_pos = jax.random.split(key)

    # Deterministic "torch.randn(max_len, d_model)"-style parameter init.
    pos_embedding = jax.random.normal(k_pos, (max_len, d_model), dtype=jnp.float32)
    x = jax.random.normal(k_x, (B, S, d_model), dtype=jnp.float32)

    # TODO(synk): dropout from __init__ is unused in forward (eval semantics); omitted.
    out = learned_positional_encoding(x, pos_embedding)
    out = jax.block_until_ready(out)

    # Reference check in plain JAX.
    ref = x + pos_embedding[:S][None, :, :]
    assert out.shape == (B, S, d_model)
    assert out.dtype == ref.dtype
    assert jnp.allclose(out, ref, atol=1e-6), "mismatch vs reference"

    print("KERNEL_OK")
</pallas_src>

<mosaic_0001>
module attributes {stable_mosaic.version = 11 : i64} {
  func.func @_add_pos_kernel(%arg0: i32, %arg1: i32, %arg2: memref<2x256xf32, #tpu.memory_space<vmem>>, %arg3: memref<1x256xf32, #tpu.memory_space<vmem>>, %arg4: memref<2x256xf32, #tpu.memory_space<vmem>>) attributes {dimension_semantics = [#tpu.dimension_semantics<parallel>, #tpu.dimension_semantics<parallel>], iteration_bounds = array<i64: 1, 1>, scalar_prefetch = 0 : i64, scratch_operands = 0 : i64, tpu.core_type = #tpu.core_type<tc>, window_params = [{transform_indices = @transform_0, window_bounds = array<i64: 2, 256>}, {transform_indices = @transform_1, window_bounds = array<i64: 1, 256>}, {transform_indices = @transform_2, window_bounds = array<i64: 2, 256>}]} {
    %c0 = arith.constant 0 : index
    %c0_0 = arith.constant 0 : index
    %0 = vector.load %arg2[%c0, %c0_0] : memref<2x256xf32, #tpu.memory_space<vmem>>, vector<2x256xf32>
    %c0_1 = arith.constant 0 : index
    %c0_2 = arith.constant 0 : index
    %1 = vector.load %arg3[%c0_1, %c0_2] : memref<1x256xf32, #tpu.memory_space<vmem>>, vector<1x256xf32>
    %2 = vector.broadcast %1 : vector<1x256xf32> to vector<2x256xf32>
    %3 = arith.addf %0, %2 : vector<2x256xf32>
    %c0_3 = arith.constant 0 : index
    %c0_4 = arith.constant 0 : index
    %4 = vector.load %arg4[%c0_3, %c0_4] : memref<2x256xf32, #tpu.memory_space<vmem>>, vector<2x256xf32>
    tpu.vector_store %arg4[%c0_3, %c0_4], %3 {strides = array<i32>} : memref<2x256xf32, #tpu.memory_space<vmem>>, vector<2x256xf32>,
    return
  }
  func.func @transform_0(%arg0: i32, %arg1: i32) -> (i32, i32) {
    %c0_i32 = arith.constant 0 : i32
    return %arg1, %arg0 : i32, i32
  }
  func.func @transform_1(%arg0: i32, %arg1: i32) -> (i32, i32) {
    %c0_i32 = arith.constant 0 : i32
    %c0_i32_0 = arith.constant 0 : i32
    return %c0_i32, %arg0 : i32, i32
  }
  func.func @transform_2(%arg0: i32, %arg1: i32) -> (i32, i32) {
    %c0_i32 = arith.constant 0 : i32
    return %arg1, %arg0 : i32, i32
  }
}

</mosaic_0001>

<llo_original>
// kernel: tpu_custom_call.1
$region0: #{tpu_custom_call.1}
  #allocation0 [shape = 'u32[]', space=smem, size = 0x4, offset = 0x4, fixed_abs, tag = 'smem constant byte address 0x4 - core index']
  #allocation1 [shape = 'u32[144,128]{1,0:T(1,128)}', space=vmem, size = 0x12000, scoped, tag = 'internal scratch']
  %s0 = inlined_call_operand.hbm [shape: f32[2,256], index: 0, kind: input, shape index: {}]
  %s1 = inlined_call_operand.vmem [shape: f32[1,256], index: 1, kind: input, shape index: {}]
  %s2 = inlined_call_operand.hbm [shape: f32[2,256], index: 2, kind: output, shape index: {}]
  %s3 = sld [smem:[#allocation0]]
  $region22: #{tpu_custom_call.1} parent=0
    _
  %s5 = ssub.s32 1, %s3
  %s6 = scalar_select 0, %s5, %s3
  $region1: #{tpu_custom_call.1} parent=0
    #allocation2 [shape = 'u8[2048]{0}', space=vmem, size = 0x800, scoped, tag = 'input window, operand 0, single buffered']
    #allocation3 [shape = 's32[1]{0}', space=sflag, size = 0x4, scoped, tag = 'scoped memory for tpu_custom_call.1']
    #allocation4 [shape = 's32[1]{0}', space=sflag, size = 0x4, scoped, tag = 'scoped memory for tpu_custom_call.1']
    #allocation5 [shape = 'u8[2048]{0}', space=vmem, size = 0x800, scoped, tag = 'output window, operand 0, single buffered']
    %7 = vsyncpa [#allocation3], 0
    %8 = vsyncpa [#allocation4], 0
    // Predicated region
    $region2: #{tpu_custom_call.1} parent=1 // pred_check
      _
    $region3: #{tpu_custom_call.1} parent=1 // pred_check_branch
      %10 = sbr.rel (0) target = $region5
    $region4: #{tpu_custom_call.1} parent=1 // pred_region
      %s12 = ssub.s32 64, 64
      %13 = vsyncadd [#allocation3], %s12
      %s15 = sshll.u32 [#allocation2], 4
      %s16 = int_to_ptr.vmem [resolvable:$true] %s15
      %18 = dma.hbm_to_vmem [thread:$0]  %s0, 64, %s16, [#allocation3]
    $region5: #{tpu_custom_call.1} parent=1 // pred_fallthru
      _
    // Predicated region
    $region6: #{tpu_custom_call.1} parent=1 // pred_check
      _
    $region7: #{tpu_custom_call.1} parent=1 // pred_check_branch
      %20 = sbr.rel (0) target = $region9
    $region8: #{tpu_custom_call.1} parent=1 // pred_region
      _
    $region9: #{tpu_custom_call.1} parent=1 // pred_fallthru
      _
    // Predicated region
    $region10: #{tpu_custom_call.1} parent=1 // pred_check
      _
    $region11: #{tpu_custom_call.1} parent=1 // pred_check_branch
      %22 = sbr.rel (0) target = $region13
    $region12: #{tpu_custom_call.1} parent=1 // pred_region
      %23 = dma.done [#allocation3], 64
    $region13: #{tpu_custom_call.1} parent=1 // pred_fallthru
      _
    %v24 = vld [vmem:[#allocation2] sm:$0xf]
    %v25 = vld [vmem:[%s1] sm:$0x3]
    %v27 = vlaneseq
    %v28 = vshrl.u32 %v27, 7
    %v29 = vsub.s32 0, %v28
    %v30 = vrot.slane %v25, %v29
    %v31 = vlaneseq
    %v32 = vshrl.u32 %v31, 7
    %v33 = vsub.s32 1, %v32
    %v34 = vrot.slane %v25, %v33
    %v35 = vcombine.low %v30, %v34
    %v37 = vunpack.c.l.s4 1983009808
    %v38 = vunpack.c.0.s8 %v37
    %v39 = vlaneseq
    %v40 = vshrl.u32 %v39, 7
    %v41 = vsub.s32 %v38, %v40
    %v42 = vrot.slane %v35, %v41
    %v44 = vadd.f32 %v24, %v42
    %45 = vst [vmem:[#allocation5] sm:$0xf] %v44
    // Predicated region
    $region14: #{tpu_custom_call.1} parent=1 // pred_check
      _
    $region15: #{tpu_custom_call.1} parent=1 // pred_check_branch
      %47 = sbr.rel (0) target = $region17
    $region16: #{tpu_custom_call.1} parent=1 // pred_region
      %s49 = ssub.s32 64, 64
      %50 = vsyncadd [#allocation4], %s49
      %s52 = sshll.u32 [#allocation5], 4
      %s53 = int_to_ptr.vmem [resolvable:$true] %s52
      %55 = dma.vmem_to_hbm [thread:$0]  %s53, 64, %s2, [#allocation4]
    $region17: #{tpu_custom_call.1} parent=1 // pred_fallthru
      _
    // Predicated region
    $region18: #{tpu_custom_call.1} parent=1 // pred_check
      _
    $region19: #{tpu_custom_call.1} parent=1 // pred_check_branch
      %57 = sbr.rel (0) target = $region21
    $region20: #{tpu_custom_call.1} parent=1 // pred_region
      %58 = dma.done [#allocation4], 64
    $region21: #{tpu_custom_call.1} parent=1 // pred_fallthru
      _
    %59 = vsyncpa [#allocation3], 1
    %60 = vsyncpa [#allocation4], 1

</llo_original>
